<compile_context>
chip_gen: v7x
topology: tpu7x:2x2x1
jax: 0.10.0
libtpu: 0.0.40
codegen_flags: <defaults>
</compile_context>

<pallas_src>
import jax
import jax.numpy as jnp
from jax.experimental import pallas as pl
from jax.experimental.pallas import tpu as pltpu


def _make_gmm_x_kernel(fold):
    """out = (Eu + Ei + time_emb) / 3 over lane-folded rows.

    time_emb for lane-group f of a folded row is cos_f * w + b, realized as
    sum_f cos[:, f:f+1] * w_masked[f, :] + b, where w_masked row f carries the
    Linear(1, D) weight in lane group f and zeros elsewhere.
    """

    def kernel(eu_ref, ei_ref, cos_ref, w_ref, b_ref, x_ref):
        eu = eu_ref[...].astype(jnp.float32)          # in-kernel cast: hides under DMA
        ei = ei_ref[...].astype(jnp.float32)
        cos = cos_ref[...].astype(jnp.float32)        # (tn, fold)
        w = w_ref[...]                                # (fold, D*fold), lane-group masked
        acc = eu + ei + b_ref[...]                    # b: (1, D*fold) sublane-broadcast
        for f in range(fold):                         # pure broadcast-FMA routing
            acc = acc + cos[:, f:f + 1] * w[f:f + 1, :]
        x_ref[...] = (acc * (1.0 / 3.0)).astype(x_ref.dtype)

    return kernel


def _round_up(x, m):
    return -(-x // m) * m


def gmm_forward_x(user_embs, item_embs, times, w, b, *,
                  tile_rows=4096, out_dtype=jnp.float32):
    """x = (Eu + Ei + Linear(1,D)(cos(times)[:,None])) / 3 on TPU.

    Eu, Ei: (N, D) (any float dtype); times: (N,) (int or float);
    w: Linear(1, D).weight, shape (D, 1) or (D,); b: (D,).
    Returns (N, D) `out_dtype` (default float32).
    """
    n, d = user_embs.shape
    assert item_embs.shape == (n, d)

    # Lane-density fold: pack `fold` consecutive rows into one (D*fold)-lane row.
    fold = 128 // d if (d < 128 and 128 % d == 0) else 1
    d2 = d * fold

    # Pad only to the fold boundary (<= fold-1 rows); never to the tile boundary.
    pad_n = (-n) % fold
    if pad_n:
        user_embs = jnp.pad(user_embs, ((0, pad_n), (0, 0)))
        item_embs = jnp.pad(item_embs, ((0, pad_n), (0, 0)))
    n_f = n + pad_n
    rows = n_f // fold

    # Fold (pure reshape of contiguous rows): (n_f, D) -> (rows, D*fold).
    eu = user_embs.reshape(rows, d2)
    ei = item_embs.reshape(rows, d2)

    # cos(times): tiny (N*4 bytes); computed in XLA for parity with the reference.
    cos_t = jnp.cos(jnp.reshape(times, (-1,)).astype(jnp.float32))
    if pad_n:
        cos_t = jnp.pad(cos_t, (0, pad_n))
    cos2 = cos_t.reshape(rows, fold)                      # one merged cos stream

    # Linear(1, D) params: lane-group-masked weight = kron(I_fold, w^T), tiled bias.
    w_row = jnp.asarray(w, jnp.float32).reshape(1, d)     # == weight.T
    b_row = jnp.asarray(b, jnp.float32).reshape(1, d)
    w_masked = jnp.kron(jnp.eye(fold, dtype=jnp.float32), w_row)   # (fold, D*fold)
    b_fold = jnp.tile(b_row, (1, fold))                             # (1, D*fold)

    # Tiling: no padding of rows; ragged last block is masked by Pallas.
    # Keep >= 2 grid steps when possible so megacore (v7x) can shard the grid.
    if rows <= 8:
        tile = rows                                       # single full-extent block
    else:
        tile = min(tile_rows, _round_up(pl.cdiv(rows, 2), 8))
        tile = max(tile, 8)
    grid = (pl.cdiv(rows, tile),)

    row_spec = pl.BlockSpec((tile, d2), lambda i: (i, 0))
    cos_spec = pl.BlockSpec((tile, fold), lambda i: (i, 0))
    w_spec = pl.BlockSpec((fold, d2), lambda i: (0, 0))
    b_spec = pl.BlockSpec((1, d2), lambda i: (0, 0))

    out_itemsize = jnp.dtype(out_dtype).itemsize
    cost = pl.CostEstimate(
        flops=int(8 * n * d),
        transcendentals=0,
        bytes_accessed=int(n * d * (user_embs.dtype.itemsize
                                    + item_embs.dtype.itemsize
                                    + out_itemsize) + n * 4),
    )

    x_folded = pl.pallas_call(
        _make_gmm_x_kernel(fold),
        out_shape=jax.ShapeDtypeStruct((rows, d2), out_dtype),
        grid_spec=pltpu.PrefetchScalarGridSpec(
            num_scalar_prefetch=0,
            grid=grid,
            in_specs=[row_spec, row_spec, cos_spec, w_spec, b_spec],
            out_specs=row_spec,
        ),
        compiler_params=pltpu.CompilerParams(
            dimension_semantics=("parallel",),
            vmem_limit_bytes=32 * 1024 * 1024,
        ),
        cost_estimate=cost,
    )(eu, ei, cos2, w_masked, b_fold)

    # Unfold and drop the (at most fold-1) padded rows.
    x = x_folded.reshape(n_f, d)
    return x[:n] if pad_n else x


if __name__ == "__main__":
    key = jax.random.PRNGKey(0)
    k_eu, k_ei, k_t, k_w, k_b = jax.random.split(key, 5)

    # Small, module-consistent shapes: N interactions, dimension=64.
    N, D = 64, 64
    user_embs = jax.random.normal(k_eu, (N, D), dtype=jnp.float32)
    item_embs = jax.random.normal(k_ei, (N, D), dtype=jnp.float32)
    times = jax.random.randint(k_t, (N,), 0, 10000)              # integer timestamps

    # nn.Linear(1, dimension): weight (D, 1), bias (D,). Deterministic init.
    w = jax.random.normal(k_w, (D, 1), dtype=jnp.float32) * 0.1
    b = jax.random.normal(k_b, (D,), dtype=jnp.float32) * 0.1

    x = gmm_forward_x(user_embs, item_embs, times, w, b)
    x = jax.block_until_ready(x)

    # Pure-JAX reference of the same semantics.
    cos_t_ref = jnp.cos(times.astype(jnp.float32))[:, None]      # (N, 1)
    time_embs_ref = cos_t_ref @ w.reshape(D, 1).T + b            # (N, D)
    x_ref = (user_embs + item_embs + time_embs_ref) / 3.0
    assert x.shape == (N, D)
    assert jnp.allclose(x, x_ref, atol=1e-5, rtol=1e-5), "mismatch vs reference"

    print("KERNEL_OK")
</pallas_src>

<mosaic_0001>
module attributes {stable_mosaic.version = 11 : i64} {
  func.func @kernel(%arg0: i32, %arg1: memref<16x128xf32, #tpu.memory_space<vmem>>, %arg2: memref<16x128xf32, #tpu.memory_space<vmem>>, %arg3: memref<16x2xf32, #tpu.memory_space<vmem>>, %arg4: memref<2x128xf32, #tpu.memory_space<vmem>>, %arg5: memref<1x128xf32, #tpu.memory_space<vmem>>, %arg6: memref<16x128xf32, #tpu.memory_space<vmem>>) attributes {dimension_semantics = [#tpu.dimension_semantics<parallel>], iteration_bounds = array<i64: 2>, scalar_prefetch = 0 : i64, scratch_operands = 0 : i64, tpu.core_type = #tpu.core_type<tc>, window_params = [{transform_indices = @transform_0, window_bounds = array<i64: 16, 128>}, {transform_indices = @transform_1, window_bounds = array<i64: 16, 128>}, {transform_indices = @transform_2, window_bounds = array<i64: 16, 2>}, {pipeline_mode = #tpu.pipeline_mode<synchronous>, transform_indices = @transform_3, window_bounds = array<i64: 2, 128>}, {pipeline_mode = #tpu.pipeline_mode<synchronous>, transform_indices = @transform_4, window_bounds = array<i64: 1, 128>}, {transform_indices = @transform_5, window_bounds = array<i64: 16, 128>}]} {
    %c0 = arith.constant 0 : index
    %c0_0 = arith.constant 0 : index
    %0 = vector.load %arg1[%c0, %c0_0] : memref<16x128xf32, #tpu.memory_space<vmem>>, vector<16x128xf32>
    %c0_1 = arith.constant 0 : index
    %c0_2 = arith.constant 0 : index
    %1 = vector.load %arg2[%c0_1, %c0_2] : memref<16x128xf32, #tpu.memory_space<vmem>>, vector<16x128xf32>
    %c0_3 = arith.constant 0 : index
    %c0_4 = arith.constant 0 : index
    %2 = vector.load %arg3[%c0_3, %c0_4] : memref<16x2xf32, #tpu.memory_space<vmem>>, vector<16x2xf32>
    %c0_5 = arith.constant 0 : index
    %c0_6 = arith.constant 0 : index
    %3 = vector.load %arg4[%c0_5, %c0_6] : memref<2x128xf32, #tpu.memory_space<vmem>>, vector<2x128xf32>
    %4 = arith.addf %0, %1 : vector<16x128xf32>
    %c0_7 = arith.constant 0 : index
    %c0_8 = arith.constant 0 : index
    %5 = vector.load %arg5[%c0_7, %c0_8] : memref<1x128xf32, #tpu.memory_space<vmem>>, vector<1x128xf32>
    %6 = vector.broadcast %5 : vector<1x128xf32> to vector<16x128xf32>
    %7 = arith.addf %4, %6 : vector<16x128xf32>
    %8 = vector.extract_strided_slice %2 {offsets = [0, 0], sizes = [16, 1], strides = [1, 1]} : vector<16x2xf32> to vector<16x1xf32>
    %9 = vector.extract_strided_slice %3 {offsets = [0, 0], sizes = [1, 128], strides = [1, 1]} : vector<2x128xf32> to vector<1x128xf32>
    %10 = vector.broadcast %8 : vector<16x1xf32> to vector<16x128xf32>
    %11 = vector.broadcast %9 : vector<1x128xf32> to vector<16x128xf32>
    %12 = arith.mulf %10, %11 : vector<16x128xf32>
    %13 = arith.addf %7, %12 : vector<16x128xf32>
    %14 = vector.extract_strided_slice %2 {offsets = [0, 1], sizes = [16, 1], strides = [1, 1]} : vector<16x2xf32> to vector<16x1xf32>
    %15 = vector.extract_strided_slice %3 {offsets = [1, 0], sizes = [1, 128], strides = [1, 1]} : vector<2x128xf32> to vector<1x128xf32>
    %16 = vector.broadcast %14 : vector<16x1xf32> to vector<16x128xf32>
    %17 = vector.broadcast %15 : vector<1x128xf32> to vector<16x128xf32>
    %18 = arith.mulf %16, %17 : vector<16x128xf32>
    %19 = arith.addf %13, %18 : vector<16x128xf32>
    %cst = arith.constant 0.333333343 : f32
    %20 = vector.broadcast %cst : f32 to vector<16x128xf32>
    %21 = arith.mulf %19, %20 : vector<16x128xf32>
    %c0_9 = arith.constant 0 : index
    %c0_10 = arith.constant 0 : index
    %22 = vector.load %arg6[%c0_9, %c0_10] : memref<16x128xf32, #tpu.memory_space<vmem>>, vector<16x128xf32>
    tpu.vector_store %arg6[%c0_9, %c0_10], %21 {strides = array<i32>} : memref<16x128xf32, #tpu.memory_space<vmem>>, vector<16x128xf32>,
    return
  }
  func.func @transform_0(%arg0: i32) -> (i32, i32) {
    %c0_i32 = arith.constant 0 : i32
    %c0_i32_0 = arith.constant 0 : i32
    return %arg0, %c0_i32 : i32, i32
  }
  func.func @transform_1(%arg0: i32) -> (i32, i32) {
    %c0_i32 = arith.constant 0 : i32
    %c0_i32_0 = arith.constant 0 : i32
    return %arg0, %c0_i32 : i32, i32
  }
  func.func @transform_2(%arg0: i32) -> (i32, i32) {
    %c0_i32 = arith.constant 0 : i32
    %c0_i32_0 = arith.constant 0 : i32
    return %arg0, %c0_i32 : i32, i32
  }
  func.func @transform_3(%arg0: i32) -> (i32, i32) {
    %c0_i32 = arith.constant 0 : i32
    %c0_i32_0 = arith.constant 0 : i32
    %c0_i32_1 = arith.constant 0 : i32
    return %c0_i32, %c0_i32_0 : i32, i32
  }
  func.func @transform_4(%arg0: i32) -> (i32, i32) {
    %c0_i32 = arith.constant 0 : i32
    %c0_i32_0 = arith.constant 0 : i32
    %c0_i32_1 = arith.constant 0 : i32
    return %c0_i32, %c0_i32_0 : i32, i32
  }
  func.func @transform_5(%arg0: i32) -> (i32, i32) {
    %c0_i32 = arith.constant 0 : i32
    %c0_i32_0 = arith.constant 0 : i32
    return %arg0, %c0_i32 : i32, i32
  }
}

</mosaic_0001>

<llo_original>
// kernel: tpu_custom_call.1
$region0: #{tpu_custom_call.1}
  #allocation0 [shape = 'u32[]', space=smem, size = 0x4, offset = 0x4, fixed_abs, tag = 'smem constant byte address 0x4 - core index']
  #allocation1 [shape = 'u32[144,128]{1,0:T(1,128)}', space=vmem, size = 0x12000, scoped, tag = 'internal scratch']
  %s0 = inlined_call_operand.vmem [shape: f32[32,128], index: 0, kind: input, shape index: {}]
  %s1 = inlined_call_operand.hbm [shape: f32[32,128], index: 1, kind: input, shape index: {}]
  %s2 = inlined_call_operand.vmem [shape: f32[32,2], index: 2, kind: input, shape index: {}]
  %s3 = inlined_call_operand.vmem [shape: f32[2,128], index: 3, kind: input, shape index: {}]
  %s4 = inlined_call_operand.vmem [shape: f32[1,128], index: 4, kind: input, shape index: {}]
  %s5 = inlined_call_operand.hbm [shape: f32[32,128], index: 5, kind: output, shape index: {}]
  %s6 = sld [smem:[#allocation0]]
  $region57: #{tpu_custom_call.1} parent=0
    _
  %s8 = ssub.s32 1, %s6
  %s9 = scalar_select 0, %s8, %s6
  $region1: #{tpu_custom_call.1} parent=0
    #allocation2 [shape = 'u8[16384]{0}', space=vmem, size = 0x4000, scoped, tag = 'input window, operand 1']
    #allocation3 [shape = 's32[2]{0}', space=sflag, size = 0x8, scoped, tag = 'scoped memory for tpu_custom_call.1']
    #allocation4 [shape = 's32[2]{0}', space=sflag, size = 0x8, scoped, tag = 'scoped memory for tpu_custom_call.1']
    #allocation5 [shape = 'u8[16384]{0}', space=vmem, size = 0x4000, scoped, tag = 'output window, operand 0']
    %10 = vsyncpa [#allocation3], 0
    %s11 = scalar_lea.sflag [#allocation3], 1
    %12 = vsyncpa %s11, 0
    %13 = vsyncpa [#allocation4], 0
    %s14 = scalar_lea.sflag [#allocation4], 1
    %15 = vsyncpa %s14, 0
    loop: start=0, step=1, limit=4
    $region2: #{tpu_custom_call.1} parent=1 // loop_pre_header
      _
    $region3: #{tpu_custom_call.1} parent=1 // loop_header
      %s17 = sphi 0, %s21
      %p18 = scmp.ge.s32.totalorder %s17, 4
      %s27 = sphi 0, %s29
      %s30 = sphi 0, %s27
      %s31 = sphi 0, %s30
      %s47 = sphi 0, %s31
      %s53 = sphi 0, %s55
      %s56 = sphi 0, %s53
      %s57 = sphi 0, %s56
      %s73 = sphi 0, %s57
      %s79 = sphi 0, %s81
      %s82 = sphi 0, %s79
      %s83 = sphi 0, %s82
      %s99 = sphi 0, %s83
      %s103 = sphi 0, %s103
      %s105 = sphi 0, %s103
      %s106 = sphi 0, %s105
      %s120 = sphi 0, %s106
      %s124 = sphi 0, %s124
      %s126 = sphi 0, %s124
      %s127 = sphi 0, %s126
      %s141 = sphi 0, %s127
      %s147 = sphi 0, %s149
      %s150 = sphi 0, %s147
      %s151 = sphi 0, %s150
      %s167 = sphi 0, %s151
    $region4: #{tpu_custom_call.1} parent=1 // loop_header_branch
      %20 = sbr.rel (%p18) target = $region8
    $region5: #{tpu_custom_call.1} parent=1 // loop_body
      %s22 = ssub.s32 %s17, 1
      %s23 = ssub.s32 %s17, 2
      %s24 = sadd.s32 %s17, 1
      %s25 = ssub.s32 %s17, %s24
      %p26 = scmp.eq.s32.totalorder %s25, 0
      %s28 = sadd.s32 %s27, 1
      %s29 = scalar_select %p26, %s27, %s28
      %p32 = pneg %p26
      %p33 = scmp.eq.s32.totalorder %s17, 1
      %p34 = por %p32, %p33
      %p35 = scmp.ne.s32.totalorder %s27, %s30
      %p36 = scmp.eq.s32.totalorder %s17, 0
      %p37 = por %p35, %p36
      %p38 = scmp.ne.s32.totalorder %s27, %s30
      %p39 = scmp.eq.s32.totalorder %s22, 1
      %p40 = por %p38, %p39
      %p41 = scmp.ne.s32.totalorder %s30, %s31
      %p42 = scmp.eq.s32.totalorder %s22, 0
      %p43 = por %p41, %p42
      %p44 = scmp.ne.s32.totalorder %s30, %s31
      %p45 = scmp.eq.s32.totalorder %s23, 1
      %p46 = por %p44, %p45
      %p48 = scmp.ne.s32.totalorder %s31, %s47
      %p49 = scmp.eq.s32.totalorder %s23, 0
      %p50 = por %p48, %p49
      %s51 = ssub.s32 %s17, %s24
      %p52 = scmp.eq.s32.totalorder %s51, 0
      %s54 = sadd.s32 %s53, 1
      %s55 = scalar_select %p52, %s53, %s54
      %p58 = pneg %p52
      %p59 = scmp.eq.s32.totalorder %s17, 1
      %p60 = por %p58, %p59
      %p61 = scmp.ne.s32.totalorder %s53, %s56
      %p62 = scmp.eq.s32.totalorder %s17, 0
      %p63 = por %p61, %p62
      %p64 = scmp.ne.s32.totalorder %s53, %s56
      %p65 = scmp.eq.s32.totalorder %s22, 1
      %p66 = por %p64, %p65
      %p67 = scmp.ne.s32.totalorder %s56, %s57
      %p68 = scmp.eq.s32.totalorder %s22, 0
      %p69 = por %p67, %p68
      %p70 = scmp.ne.s32.totalorder %s56, %s57
      %p71 = scmp.eq.s32.totalorder %s23, 1
      %p72 = por %p70, %p71
      %p74 = scmp.ne.s32.totalorder %s57, %s73
      %p75 = scmp.eq.s32.totalorder %s23, 0
      %p76 = por %p74, %p75
      %s77 = ssub.s32 %s17, %s24
      %p78 = scmp.eq.s32.totalorder %s77, 0
      %s80 = sadd.s32 %s79, 1
      %s81 = scalar_select %p78, %s79, %s80
      %p84 = pneg %p78
      %p85 = scmp.eq.s32.totalorder %s17, 1
      %p86 = por %p84, %p85
      %p87 = scmp.ne.s32.totalorder %s79, %s82
      %p88 = scmp.eq.s32.totalorder %s17, 0
      %p89 = por %p87, %p88
      %p90 = scmp.ne.s32.totalorder %s79, %s82
      %p91 = scmp.eq.s32.totalorder %s22, 1
      %p92 = por %p90, %p91
      %p93 = scmp.ne.s32.totalorder %s82, %s83
      %p94 = scmp.eq.s32.totalorder %s22, 0
      %p95 = por %p93, %p94
      %p96 = scmp.ne.s32.totalorder %s82, %s83
      %p97 = scmp.eq.s32.totalorder %s23, 1
      %p98 = por %p96, %p97
      %p100 = scmp.ne.s32.totalorder %s83, %s99
      %p101 = scmp.eq.s32.totalorder %s23, 0
      %p102 = por %p100, %p101
      %s104 = sadd.s32 %s103, 1
      %p107 = scmp.eq.s32.totalorder %s17, 1
      %p108 = scmp.ne.s32.totalorder %s103, %s105
      %p109 = scmp.eq.s32.totalorder %s17, 0
      %p110 = por %p108, %p109
      %p111 = scmp.ne.s32.totalorder %s103, %s105
      %p112 = scmp.eq.s32.totalorder %s22, 1
      %p113 = por %p111, %p112
      %p114 = scmp.ne.s32.totalorder %s105, %s106
      %p115 = scmp.eq.s32.totalorder %s22, 0
      %p116 = por %p114, %p115
      %p117 = scmp.ne.s32.totalorder %s105, %s106
      %p118 = scmp.eq.s32.totalorder %s23, 1
      %p119 = por %p117, %p118
      %p121 = scmp.ne.s32.totalorder %s106, %s120
      %p122 = scmp.eq.s32.totalorder %s23, 0
      %p123 = por %p121, %p122
      %s125 = sadd.s32 %s124, 1
      %p128 = scmp.eq.s32.totalorder %s17, 1
      %p129 = scmp.ne.s32.totalorder %s124, %s126
      %p130 = scmp.eq.s32.totalorder %s17, 0
      %p131 = por %p129, %p130
      %p132 = scmp.ne.s32.totalorder %s124, %s126
      %p133 = scmp.eq.s32.totalorder %s22, 1
      %p134 = por %p132, %p133
      %p135 = scmp.ne.s32.totalorder %s126, %s127
      %p136 = scmp.eq.s32.totalorder %s22, 0
      %p137 = por %p135, %p136
      %p138 = scmp.ne.s32.totalorder %s126, %s127
      %p139 = scmp.eq.s32.totalorder %s23, 1
      %p140 = por %p138, %p139
      %p142 = scmp.ne.s32.totalorder %s127, %s141
      %p143 = scmp.eq.s32.totalorder %s23, 0
      %p144 = por %p142, %p143
      %s145 = ssub.s32 %s17, %s24
      %p146 = scmp.eq.s32.totalorder %s145, 0
      %s148 = sadd.s32 %s147, 1
      %s149 = scalar_select %p146, %s147, %s148
      %p152 = pneg %p146
      %p153 = scmp.eq.s32.totalorder %s17, 1
      %p154 = por %p152, %p153
      %p155 = scmp.ne.s32.totalorder %s147, %s150
      %p156 = scmp.eq.s32.totalorder %s17, 0
      %p157 = por %p155, %p156
      %p158 = scmp.ne.s32.totalorder %s147, %s150
      %p159 = scmp.eq.s32.totalorder %s22, 1
      %p160 = por %p158, %p159
      %p161 = scmp.ne.s32.totalorder %s150, %s151
      %p162 = scmp.eq.s32.totalorder %s22, 0
      %p163 = por %p161, %p162
      %p164 = scmp.ne.s32.totalorder %s150, %s151
      %p165 = scmp.eq.s32.totalorder %s23, 1
      %p166 = por %p164, %p165
      %p168 = scmp.ne.s32.totalorder %s151, %s167
      %p169 = scmp.eq.s32.totalorder %s23, 0
      %p170 = por %p168, %p169
      %p171 = scmp.le.s32.totalorder 1, %s17
      %p172 = scmp.lt.s32.totalorder %s17, 3
      %p173 = pnand %p171, %p172
      %p174 = pneg %p173
      // Predicated region
      $region9: #{tpu_custom_call.1} parent=5 // pred_check
        _
      $region10: #{tpu_custom_call.1} parent=5 // pred_check_branch
        %176 = sbr.rel (%p173) target = $region12
      $region11: #{tpu_custom_call.1} parent=5 // pred_region
        %s177 = ssub.s32 %s17, 1
        // Predicated region
        $region13: #{tpu_custom_call.1} parent=11 // pred_check
          %p178 = pneg %p116
        $region14: #{tpu_custom_call.1} parent=11 // pred_check_branch
          %180 = sbr.rel (%p178) target = $region16
        $region15: #{tpu_custom_call.1} parent=11 // pred_region
          _
        $region16: #{tpu_custom_call.1} parent=11 // pred_fallthru
          _
        // Predicated region
        $region17: #{tpu_custom_call.1} parent=11 // pred_check
          %p181 = pneg %p137
        $region18: #{tpu_custom_call.1} parent=11 // pred_check_branch
          %183 = sbr.rel (%p181) target = $region20
        $region19: #{tpu_custom_call.1} parent=11 // pred_region
          _
        $region20: #{tpu_custom_call.1} parent=11 // pred_fallthru
          _
      $region12: #{tpu_custom_call.1} parent=5 // pred_fallthru
        _
      %p184 = scmp.lt.s32.totalorder %s17, 2
      // Predicated region
      $region21: #{tpu_custom_call.1} parent=5 // pred_check
        %p185 = pneg %p184
      $region22: #{tpu_custom_call.1} parent=5 // pred_check_branch
        %187 = sbr.rel (%p185) target = $region24
      $region23: #{tpu_custom_call.1} parent=5 // pred_region
        // Predicated region
        $region25: #{tpu_custom_call.1} parent=23 // pred_check
          %p188 = pneg %p37
        $region26: #{tpu_custom_call.1} parent=23 // pred_check_branch
          %190 = sbr.rel (%p188) target = $region28
        $region27: #{tpu_custom_call.1} parent=23 // pred_region
          %s191 = smul.u32 2, %s17
          %p192 = scmp.lt.s32.totalorder %s191, 3
          %s193 = scalar_select %p192, %s191, 3
          %s194 = smul.addr %s193, 8
          %s195 = scalar_lea.vmem %s0, %s194
          %s196 = smul.u32 2, %s17
        $region28: #{tpu_custom_call.1} parent=23 // pred_fallthru
          _
        // Predicated region
        $region29: #{tpu_custom_call.1} parent=23 // pred_check
          %p197 = pneg %p63
        $region30: #{tpu_custom_call.1} parent=23 // pred_check_branch
          %199 = sbr.rel (%p197) target = $region32
        $region31: #{tpu_custom_call.1} parent=23 // pred_region
          %s200 = sand.u32 %s53, 1
          %s201 = scalar_lea.sflag [#allocation3], %s200
          %s202 = sand.u32 %s53, 1
          %s203 = smul.addr %s202, 16
          %s204 = scalar_lea.vmem [#allocation2], %s203
          %s205 = smul.u32 2, %s17
          %s207 = ssub.s32 256, 256
          %208 = vsyncadd %s201, %s207
          %s209 = smul.addr %s205, 128
          %s210 = scalar_lea.hbm %s1, %s209
          %s211 = sshll.u32 %s204, 4
          %s212 = int_to_ptr.vmem [resolvable:$true] %s211
          %217 = dma.hbm_to_vmem [thread:$0]  %s210, 256, %s212, %s201, 128, 128, 8
        $region32: #{tpu_custom_call.1} parent=23 // pred_fallthru
          _
        // Predicated region
        $region33: #{tpu_custom_call.1} parent=23 // pred_check
          %p218 = pneg %p89
        $region34: #{tpu_custom_call.1} parent=23 // pred_check_branch
          %220 = sbr.rel (%p218) target = $region36
        $region35: #{tpu_custom_call.1} parent=23 // pred_region
          %s221 = smul.u32 2, %s17
          %p222 = scmp.lt.s32.totalorder %s221, 3
          %s223 = scalar_select %p222, %s221, 3
          %s224 = smul.addr %s223, 8
          %s225 = scalar_lea.vmem %s2, %s224
          %s226 = smul.u32 2, %s17
        $region36: #{tpu_custom_call.1} parent=23 // pred_fallthru
          _
      $region24: #{tpu_custom_call.1} parent=5 // pred_fallthru
        _
      %p227 = scmp.le.s32.totalorder 1, %s17
      %p228 = scmp.lt.s32.totalorder %s17, 3
      %p229 = pnand %p227, %p228
      %p230 = pneg %p229
      // Predicated region
      $region37: #{tpu_custom_call.1} parent=5 // pred_check
        _
      $region38: #{tpu_custom_call.1} parent=5 // pred_check_branch
        %232 = sbr.rel (%p229) target = $region40
      $region39: #{tpu_custom_call.1} parent=5 // pred_region
        %s233 = ssub.s32 %s17, 1
        %s234 = sand.u32 %s56, 1
        %s235 = scalar_lea.sflag [#allocation3], %s234
        %s236 = sand.u32 %s56, 1
        %s237 = smul.addr %s236, 16
        %s238 = scalar_lea.vmem [#allocation2], %s237
        // Predicated region
        $region41: #{tpu_custom_call.1} parent=39 // pred_check
          %p239 = pneg %p69
        $region42: #{tpu_custom_call.1} parent=39 // pred_check_branch
          %241 = sbr.rel (%p239) target = $region44
        $region43: #{tpu_custom_call.1} parent=39 // pred_region
          %242 = dma.done %s235, 256
        $region44: #{tpu_custom_call.1} parent=39 // pred_fallthru
          _
        %s243 = smul.u32 2, %s22
        %p244 = scmp.lt.s32.totalorder %s243, 3
        %s245 = scalar_select %p244, %s243, 3
        %s246 = smul.addr %s245, 8
        %s247 = scalar_lea.vmem %s0, %s246
        %p248 = pneg %p43
        %p249 = pneg %p40
        %s250 = sand.u32 %s56, 1
        %s251 = scalar_lea.sflag [#allocation3], %s250
        %s252 = sand.u32 %s56, 1
        %s253 = smul.addr %s252, 16
        %s254 = scalar_lea.vmem [#allocation2], %s253
        %p255 = pneg %p69
        %p256 = pneg %p66
        %s257 = smul.u32 2, %s22
        %p258 = scmp.lt.s32.totalorder %s257, 3
        %s259 = scalar_select %p258, %s257, 3
        %s260 = smul.addr %s259, 8
        %s261 = scalar_lea.vmem %s2, %s260
        %p262 = pneg %p95
        %p263 = pneg %p92
        %p264 = pneg %p116
        %p265 = pneg %p113
        %p266 = pneg %p137
        %p267 = pneg %p134
        %p268 = pneg %p163
        %p269 = pneg %p160
        %s270 = sand.u32 %s150, 1
        %s271 = scalar_lea.sflag [#allocation4], %s270
        %s272 = sand.u32 %s150, 1
        %s273 = smul.addr %s272, 16
        %s274 = scalar_lea.vmem [#allocation5], %s273
        %s275 = smul.u32 2, %s22
        %p276 = scmp.lt.s32.totalorder %s275, 3
        %s277 = scalar_select %p276, %s275, 3
        %s278 = smul.addr %s277, 8
        %s279 = scalar_lea.vmem %s0, %s278
        %s280 = smul.u32 2, %s22
        %s281 = smul.u32 2, %s22
        %s282 = smul.u32 2, %s22
        %p283 = scmp.lt.s32.totalorder %s282, 3
        %s284 = scalar_select %p283, %s282, 3
        %s285 = smul.addr %s284, 8
        %s286 = scalar_lea.vmem %s2, %s285
        %s287 = smul.u32 2, %s22
        %s288 = smul.u32 2, %s22
        %v289 = vld [vmem:[%s279] sm:$0xff]
        %v290 = vld [vmem:[%s279 + $0x8] sm:$0xff]
        %v291 = vld [vmem:[%s238] sm:$0xff]
        %v292 = vld [vmem:[%s238 + $0x8] sm:$0xff]
        %v293 = vld [vmem:[%s286] sm:$0xff]
        %v294 = vld [vmem:[%s286 + $0x8] sm:$0xff]
        %v295 = vld [vmem:[%s3] sm:$0x3]
        %v296 = vadd.f32 %v289, %v291
        %v297 = vadd.f32 %v290, %v292
        %v298 = vld [vmem:[%s4] sm:$0x1]
        %v300 = vlaneseq
        %v301 = vshrl.u32 %v300, 7
        %v302 = vsub.s32 0, %v301
        %v303 = vrot.slane %v298, %v302
        %v305 = vadd.f32 %v296, %v303
        %v306 = vadd.f32 %v297, %v303
        %308 = vset.pattern.permute.xlu0 0
        %309 = vperm.xlu0 %308, %v293
        %v310 = vpop.permute.xlu0 %309
        %313 = vset.pattern.permute.xlu0 0
        %314 = vperm.xlu0 %313, %v294
        %v315 = vpop.permute.xlu0 %314
        %v317 = vlaneseq
        %v318 = vshrl.u32 %v317, 7
        %v319 = vsub.s32 0, %v318
        %v320 = vrot.slane %v295, %v319
        %v321 = vmul.f32 %v310, %v320
        %v322 = vmul.f32 %v315, %v320
        %v323 = vadd.f32 %v305, %v321
        %v324 = vadd.f32 %v306, %v322
        %325 = vset.pattern.permute.xlu0 1
        %326 = vperm.xlu0 %325, %v293
        %v327 = vpop.permute.xlu0 %326
        %329 = vset.pattern.permute.xlu0 1
        %330 = vperm.xlu0 %329, %v294
        %v331 = vpop.permute.xlu0 %330
        %v333 = vlaneseq
        %v334 = vshrl.u32 %v333, 7
        %v335 = vsub.s32 1, %v334
        %v336 = vrot.slane %v295, %v335
        %v337 = vmul.f32 %v327, %v336
        %v338 = vmul.f32 %v331, %v336
        %v339 = vadd.f32 %v323, %v337
        %v340 = vadd.f32 %v324, %v338
        %v341 = vmul.f32 %v339, 0.33333334
        %v342 = vmul.f32 %v340, 0.33333334
        %343 = vst [vmem:[%s274] sm:$0xff] %v341
        %344 = vst [vmem:[%s274 + $0x8] sm:$0xff] %v342
        %s345 = sand.u32 %s150, 1
        %s346 = scalar_lea.sflag [#allocation4], %s345
        %s347 = sand.u32 %s150, 1
        %s348 = smul.addr %s347, 16
        %s349 = scalar_lea.vmem [#allocation5], %s348
        // Predicated region
        $region45: #{tpu_custom_call.1} parent=39 // pred_check
          %p350 = pneg %p160
        $region46: #{tpu_custom_call.1} parent=39 // pred_check_branch
          %352 = sbr.rel (%p350) target = $region48
        $region47: #{tpu_custom_call.1} parent=39 // pred_region
          %s353 = smul.u32 2, %s22
          %s355 = ssub.s32 256, 256
          %356 = vsyncadd %s346, %s355
          %s357 = smul.addr %s353, 128
          %s358 = scalar_lea.hbm %s5, %s357
          %s359 = sshll.u32 %s349, 4
          %s360 = int_to_ptr.vmem [resolvable:$true] %s359
          %365 = dma.vmem_to_hbm [thread:$0]  %s360, 256, %s358, %s346, 128, 128, 8
        $region48: #{tpu_custom_call.1} parent=39 // pred_fallthru
          _
      $region40: #{tpu_custom_call.1} parent=5 // pred_fallthru
        _
      %p366 = scmp.le.s32.totalorder 2, %s17
      // Predicated region
      $region49: #{tpu_custom_call.1} parent=5 // pred_check
        %p367 = pneg %p366
      $region50: #{tpu_custom_call.1} parent=5 // pred_check_branch
        %369 = sbr.rel (%p367) target = $region52
      $region51: #{tpu_custom_call.1} parent=5 // pred_region
        %s370 = ssub.s32 %s17, 2
        // Predicated region
        $region53: #{tpu_custom_call.1} parent=51 // pred_check
          %p371 = pneg %p166
        $region54: #{tpu_custom_call.1} parent=51 // pred_check_branch
          %373 = sbr.rel (%p371) target = $region56
        $region55: #{tpu_custom_call.1} parent=51 // pred_region
          %s374 = sand.u32 %s151, 1
          %s375 = scalar_lea.sflag [#allocation4], %s374
          %s376 = sand.u32 %s151, 1
          %s377 = smul.addr %s376, 16
          %s378 = scalar_lea.vmem [#allocation5], %s377
          %379 = dma.done %s375, 256
        $region56: #{tpu_custom_call.1} parent=51 // pred_fallthru
          _
      $region52: #{tpu_custom_call.1} parent=5 // pred_fallthru
        _
    $region6: #{tpu_custom_call.1} parent=1 // loop_footer
      %s21 = sadd.s32 1, %s17
    $region7: #{tpu_custom_call.1} parent=1 // loop_footer_branch
      %16 = sbr.rel target = $region3
    $region8: #{tpu_custom_call.1} parent=1 // loop_exit
      _
    %380 = vsyncpa [#allocation3], 1
    %s381 = scalar_lea.sflag [#allocation3], 1
    %382 = vsyncpa %s381, 1
    %383 = vsyncpa [#allocation4], 1
    %s384 = scalar_lea.sflag [#allocation4], 1
    %385 = vsyncpa %s384, 1

</llo_original>
